<compile_context>
chip_gen: v6e
topology: v6e:2x2x1
jax: 0.10.0
libtpu: 0.0.40
codegen_flags: <defaults>
</compile_context>

<pallas_src>
import functools

import jax
import jax.numpy as jnp
from jax import lax
from jax.experimental import pallas as pl
from jax.experimental.pallas import tpu as pltpu


LEAKY_SLOPE = 0.1
BN_EPS = 1e-5


def _head_kernel(p_ref, w1_ref, shift_ref, w2_ref, b2_ref, o_ref):
    """One image per grid step, computed in (channels, spatial) orientation.

    p_ref:     (1, 9*Cin, H*W)  im2col patch matrix (spatial in lanes)
    w1_ref:    (Cmid, 9*Cin)    3x3 conv weights with BN scale folded in
    shift_ref: (Cmid, 1)        folded BN shift = beta - mean * scale
    w2_ref:    (Cout, Cmid)     1x1 conv weights
    b2_ref:    (Cout, 1)        1x1 conv bias
    o_ref:     (1, Cout, H*W)   output (== NCHW after a free reshape)
    """
    p = p_ref[0]                                              # (9*Cin, H*W)

    # Conv3x3 (+ folded BN scale) as a single K = 9*Cin GEMM on the MXU.
    y = jnp.dot(w1_ref[...], p, preferred_element_type=jnp.float32)
    y = y + shift_ref[...]                                    # BN shift
    y = jnp.where(y > 0, y, LEAKY_SLOPE * y)                  # LeakyReLU(0.1)

    # Conv1x1 == channel GEMM + bias; output stays lane-dense in H*W.
    out = jnp.dot(w2_ref[...], y, preferred_element_type=jnp.float32)
    out = out + b2_ref[...]

    o_ref[0] = out.astype(o_ref.dtype)


@functools.partial(jax.jit, static_argnames=())
def head_forward(x_nchw, w1, gamma, beta, run_mean, run_var, w2, b2):
    """x_nchw: (N, Cin, H, W) float32.  Returns (N, Cout, H, W) float32."""
    N, Cin, H, W = x_nchw.shape
    Cmid = w1.shape[0]          # w1: (Cmid, Cin, 3, 3)  (PyTorch OIHW)
    Cout = w2.shape[0]          # w2: (Cout, Cmid, 1, 1)
    HW = H * W
    K = 9 * Cin

    # --- im2col with padding folded in (single fused XLA producer) --------
    # patches[n, tap*Cin + c, h*W + w] = x_pad[n, c, h+dy, w+dx], tap = dy*3+dx
    x_pad = jnp.pad(x_nchw, ((0, 0), (0, 0), (1, 1), (1, 1)))
    taps = [x_pad[:, :, dy:dy + H, dx:dx + W]
            for dy in range(3) for dx in range(3)]
    patches = jnp.stack(taps, axis=1).reshape(N, K, HW)       # (N, 9*Cin, HW)

    # --- fold BN (eval) into the 3x3 weights -------------------------------
    scale = gamma / jnp.sqrt(run_var + BN_EPS)                # (Cmid,)
    shift = (beta - run_mean * scale).reshape(Cmid, 1)        # (Cmid, 1)
    # (Cmid, Cin, 3, 3) -> (Cmid, 3, 3, Cin) -> (Cmid, 9*Cin), then scale rows.
    w1f = jnp.transpose(w1, (0, 2, 3, 1)).reshape(Cmid, K) * scale[:, None]
    w2_mat = w2.reshape(Cout, Cmid)                           # (Cout, Cmid)
    b2_col = b2.reshape(Cout, 1)                              # (Cout, 1)

    out = pl.pallas_call(
        _head_kernel,
        out_shape=jax.ShapeDtypeStruct((N, Cout, HW), jnp.float32),
        grid_spec=pltpu.PrefetchScalarGridSpec(
            num_scalar_prefetch=0,
            grid=(N,),
            in_specs=[
                pl.BlockSpec((1, K, HW), lambda n: (n, 0, 0)),
                pl.BlockSpec((Cmid, K), lambda n: (0, 0)),
                pl.BlockSpec((Cmid, 1), lambda n: (0, 0)),
                pl.BlockSpec((Cout, Cmid), lambda n: (0, 0)),
                pl.BlockSpec((Cout, 1), lambda n: (0, 0)),
            ],
            out_specs=pl.BlockSpec((1, Cout, HW), lambda n: (n, 0, 0)),
        ),
        compiler_params=pltpu.CompilerParams(
            dimension_semantics=("parallel",)),
    )(patches, w1f, shift, w2_mat, b2_col)

    # (N, Cout, H*W) -> (N, Cout, H, W): pure reshape, no transpose needed.
    return out.reshape(N, Cout, H, W)


def _reference_forward(x_nchw, w1, gamma, beta, run_mean, run_var, w2, b2):
    """Pure-JAX reference matching the PyTorch module (eval-mode BN)."""
    dn = lax.conv_dimension_numbers(x_nchw.shape, w1.shape,
                                    ("NCHW", "OIHW", "NCHW"))
    y = lax.conv_general_dilated(x_nchw, w1, (1, 1), ((1, 1), (1, 1)),
                                 dimension_numbers=dn)
    scale = gamma / jnp.sqrt(run_var + BN_EPS)
    shift = beta - run_mean * scale
    y = y * scale[None, :, None, None] + shift[None, :, None, None]
    y = jnp.where(y > 0, y, LEAKY_SLOPE * y)
    dn2 = lax.conv_dimension_numbers(y.shape, w2.shape,
                                     ("NCHW", "OIHW", "NCHW"))
    out = lax.conv_general_dilated(y, w2, (1, 1), ((0, 0), (0, 0)),
                                   dimension_numbers=dn2)
    return out + b2[None, :, None, None]


if __name__ == "__main__":
    # Small shapes consistent with the module.
    N, Cin, H, W = 2, 4, 16, 16
    nanchors, nclasses = 3, 2
    Cmid = 2 * Cin
    Cout = nanchors * (5 + nclasses)   # 21

    key = jax.random.PRNGKey(0)
    k_x, k_w1, k_g, k_b, k_m, k_v, k_w2, k_b2 = jax.random.split(key, 8)

    x = jax.random.normal(k_x, (N, Cin, H, W), jnp.float32)

    # Deterministic synthetic parameters (PyTorch shapes).
    w1 = jax.random.normal(k_w1, (Cmid, Cin, 3, 3), jnp.float32) * 0.1
    gamma = 1.0 + 0.1 * jax.random.normal(k_g, (Cmid,), jnp.float32)
    beta = 0.1 * jax.random.normal(k_b, (Cmid,), jnp.float32)
    run_mean = 0.1 * jax.random.normal(k_m, (Cmid,), jnp.float32)
    run_var = 1.0 + 0.1 * jax.random.uniform(k_v, (Cmid,), jnp.float32)
    w2 = jax.random.normal(k_w2, (Cout, Cmid, 1, 1), jnp.float32) * 0.1
    b2 = 0.1 * jax.random.normal(k_b2, (Cout,), jnp.float32)

    out = head_forward(x, w1, gamma, beta, run_mean, run_var, w2, b2)
    out = jax.block_until_ready(out)

    ref = _reference_forward(x, w1, gamma, beta, run_mean, run_var, w2, b2)
    assert out.shape == (N, Cout, H, W), out.shape
    assert jnp.allclose(out, ref, atol=1e-4, rtol=1e-4), \
        float(jnp.max(jnp.abs(out - ref)))

    print("KERNEL_OK")
</pallas_src>

<mosaic_0001>
module attributes {stable_mosaic.version = 11 : i64} {
  func.func @_head_kernel(%arg0: i32, %arg1: memref<1x36x256xf32, #tpu.memory_space<vmem>>, %arg2: memref<8x36xf32, #tpu.memory_space<vmem>>, %arg3: memref<8x1xf32, #tpu.memory_space<vmem>>, %arg4: memref<21x8xf32, #tpu.memory_space<vmem>>, %arg5: memref<21x1xf32, #tpu.memory_space<vmem>>, %arg6: memref<1x21x256xf32, #tpu.memory_space<vmem>>) attributes {dimension_semantics = [#tpu.dimension_semantics<parallel>], iteration_bounds = array<i64: 2>, scalar_prefetch = 0 : i64, scratch_operands = 0 : i64, tpu.core_type = #tpu.core_type<tc>, window_params = [{transform_indices = @transform_0, window_bounds = array<i64: 1, 36, 256>}, {pipeline_mode = #tpu.pipeline_mode<synchronous>, transform_indices = @transform_1, window_bounds = array<i64: 8, 36>}, {pipeline_mode = #tpu.pipeline_mode<synchronous>, transform_indices = @transform_2, window_bounds = array<i64: 8, 1>}, {pipeline_mode = #tpu.pipeline_mode<synchronous>, transform_indices = @transform_3, window_bounds = array<i64: 21, 8>}, {pipeline_mode = #tpu.pipeline_mode<synchronous>, transform_indices = @transform_4, window_bounds = array<i64: 21, 1>}, {transform_indices = @transform_5, window_bounds = array<i64: 1, 21, 256>}]} {
    %c0 = arith.constant 0 : index
    %c0_0 = arith.constant 0 : index
    %c0_1 = arith.constant 0 : index
    %0 = vector.load %arg1[%c0, %c0_0, %c0_1] : memref<1x36x256xf32, #tpu.memory_space<vmem>>, vector<1x36x256xf32>
    %1 = vector.shape_cast %0 : vector<1x36x256xf32> to vector<36x256xf32>
    %c0_2 = arith.constant 0 : index
    %c0_3 = arith.constant 0 : index
    %2 = vector.load %arg2[%c0_2, %c0_3] : memref<8x36xf32, #tpu.memory_space<vmem>>, vector<8x36xf32>
    %cst = arith.constant dense<0.000000e+00> : vector<8x256xf32>
    %3 = tpu.matmul %2, %1, %cst {dimension_numbers = #tpu.dot_dimension_numbers<[1], [0], [0], [1], [0, 0, 1, 1], [], []>} : vector<8x36xf32>, vector<36x256xf32>, vector<8x256xf32> -> vector<8x256xf32>
    %c0_4 = arith.constant 0 : index
    %c0_5 = arith.constant 0 : index
    %4 = vector.load %arg3[%c0_4, %c0_5] : memref<8x1xf32, #tpu.memory_space<vmem>>, vector<8x1xf32>
    %5 = vector.broadcast %4 : vector<8x1xf32> to vector<8x256xf32>
    %6 = arith.addf %3, %5 : vector<8x256xf32>
    %cst_6 = arith.constant 0.000000e+00 : f32
    %7 = vector.broadcast %cst_6 : f32 to vector<8x256xf32>
    %8 = arith.cmpf ogt, %6, %7 : vector<8x256xf32>
    %cst_7 = arith.constant 1.000000e-01 : f32
    %9 = vector.broadcast %cst_7 : f32 to vector<8x256xf32>
    %10 = arith.mulf %9, %6 : vector<8x256xf32>
    %11 = arith.select %8, %6, %10 : vector<8x256xi1>, vector<8x256xf32>
    %c0_8 = arith.constant 0 : index
    %c0_9 = arith.constant 0 : index
    %12 = vector.load %arg4[%c0_8, %c0_9] : memref<21x8xf32, #tpu.memory_space<vmem>>, vector<21x8xf32>
    %cst_10 = arith.constant dense<0.000000e+00> : vector<21x256xf32>
    %13 = tpu.matmul %12, %11, %cst_10 {dimension_numbers = #tpu.dot_dimension_numbers<[1], [0], [0], [1], [0, 0, 1, 1], [], []>} : vector<21x8xf32>, vector<8x256xf32>, vector<21x256xf32> -> vector<21x256xf32>
    %c0_11 = arith.constant 0 : index
    %c0_12 = arith.constant 0 : index
    %14 = vector.load %arg5[%c0_11, %c0_12] : memref<21x1xf32, #tpu.memory_space<vmem>>, vector<21x1xf32>
    %15 = vector.broadcast %14 : vector<21x1xf32> to vector<21x256xf32>
    %16 = arith.addf %13, %15 : vector<21x256xf32>
    %c0_13 = arith.constant 0 : index
    %c0_14 = arith.constant 0 : index
    %c0_15 = arith.constant 0 : index
    %17 = vector.load %arg6[%c0_13, %c0_14, %c0_15] : memref<1x21x256xf32, #tpu.memory_space<vmem>>, vector<1x21x256xf32>
    %18 = vector.shape_cast %17 : vector<1x21x256xf32> to vector<21x256xf32>
    %19 = vector.shape_cast %16 : vector<21x256xf32> to vector<1x21x256xf32>
    tpu.vector_store %arg6[%c0_13, %c0_14, %c0_15], %19 {strides = array<i32>} : memref<1x21x256xf32, #tpu.memory_space<vmem>>, vector<1x21x256xf32>,
    return
  }
  func.func @transform_0(%arg0: i32) -> (i32, i32, i32) {
    %c0_i32 = arith.constant 0 : i32
    %c0_i32_0 = arith.constant 0 : i32
    %c0_i32_1 = arith.constant 0 : i32
    return %arg0, %c0_i32, %c0_i32_0 : i32, i32, i32
  }
  func.func @transform_1(%arg0: i32) -> (i32, i32) {
    %c0_i32 = arith.constant 0 : i32
    %c0_i32_0 = arith.constant 0 : i32
    %c0_i32_1 = arith.constant 0 : i32
    return %c0_i32, %c0_i32_0 : i32, i32
  }
  func.func @transform_2(%arg0: i32) -> (i32, i32) {
    %c0_i32 = arith.constant 0 : i32
    %c0_i32_0 = arith.constant 0 : i32
    %c0_i32_1 = arith.constant 0 : i32
    return %c0_i32, %c0_i32_0 : i32, i32
  }
  func.func @transform_3(%arg0: i32) -> (i32, i32) {
    %c0_i32 = arith.constant 0 : i32
    %c0_i32_0 = arith.constant 0 : i32
    %c0_i32_1 = arith.constant 0 : i32
    return %c0_i32, %c0_i32_0 : i32, i32
  }
  func.func @transform_4(%arg0: i32) -> (i32, i32) {
    %c0_i32 = arith.constant 0 : i32
    %c0_i32_0 = arith.constant 0 : i32
    %c0_i32_1 = arith.constant 0 : i32
    return %c0_i32, %c0_i32_0 : i32, i32
  }
  func.func @transform_5(%arg0: i32) -> (i32, i32, i32) {
    %c0_i32 = arith.constant 0 : i32
    %c0_i32_0 = arith.constant 0 : i32
    %c0_i32_1 = arith.constant 0 : i32
    return %arg0, %c0_i32, %c0_i32_0 : i32, i32, i32
  }
}

</mosaic_0001>

<llo_original>
// kernel: head_forward.1
$region0: #{head_forward.1}
  #allocation0 [shape = 'u32[]', space=smem, size = 0x4, offset = 0x4, fixed_abs, tag = 'smem constant byte address 0x4 - core index']
  #allocation1 [shape = 'u32[144,128]{1,0:T(1,128)}', space=vmem, size = 0x12000, scoped, tag = 'internal scratch']
  %s0 = inlined_call_operand.vmem [shape: f32[2,36,256], index: 0, kind: input, shape index: {}]
  %s1 = inlined_call_operand.vmem [shape: f32[8,36], index: 1, kind: input, shape index: {}]
  %s2 = inlined_call_operand.vmem [shape: f32[8,1], index: 2, kind: input, shape index: {}]
  %s3 = inlined_call_operand.vmem [shape: f32[21,8], index: 3, kind: input, shape index: {}]
  %s4 = inlined_call_operand.vmem [shape: f32[21,1], index: 4, kind: input, shape index: {}]
  %s5 = inlined_call_operand.vmem [shape: f32[2,21,256], index: 5, kind: output, shape index: {}]
  %s6 = sld [smem:[#allocation0]]
  $region53: #{head_forward.1} parent=0
    _
  %s8 = ssub.s32 1, %s6
  %s9 = scalar_select 0, %s8, %s6
  loop: start=0, step=1, limit=4
  $region2: #{head_forward.1} parent=0 // loop_pre_header
    _
  $region3: #{head_forward.1} parent=0 // loop_header
    %s11 = sphi 0, %s15
    %p12 = scmp.ge.s32.totalorder %s11, 4
    %s21 = sphi 0, %s23
    %s24 = sphi 0, %s21
    %s25 = sphi 0, %s24
    %s41 = sphi 0, %s25
    %s45 = sphi 0, %s45
    %s47 = sphi 0, %s45
    %s48 = sphi 0, %s47
    %s62 = sphi 0, %s48
    %s66 = sphi 0, %s66
    %s68 = sphi 0, %s66
    %s69 = sphi 0, %s68
    %s83 = sphi 0, %s69
    %s87 = sphi 0, %s87
    %s89 = sphi 0, %s87
    %s90 = sphi 0, %s89
    %s104 = sphi 0, %s90
    %s108 = sphi 0, %s108
    %s110 = sphi 0, %s108
    %s111 = sphi 0, %s110
    %s125 = sphi 0, %s111
    %s131 = sphi 0, %s133
    %s134 = sphi 0, %s131
    %s135 = sphi 0, %s134
    %s151 = sphi 0, %s135
  $region4: #{head_forward.1} parent=0 // loop_header_branch
    %14 = sbr.rel (%p12) target = $region8
  $region5: #{head_forward.1} parent=0 // loop_body
    %s16 = ssub.s32 %s11, 1
    %s17 = ssub.s32 %s11, 2
    %s18 = sadd.s32 %s11, 1
    %s19 = ssub.s32 %s11, %s18
    %p20 = scmp.eq.s32.totalorder %s19, 0
    %s22 = sadd.s32 %s21, 1
    %s23 = scalar_select %p20, %s21, %s22
    %p26 = pneg %p20
    %p27 = scmp.eq.s32.totalorder %s11, 1
    %p28 = por %p26, %p27
    %p29 = scmp.ne.s32.totalorder %s21, %s24
    %p30 = scmp.eq.s32.totalorder %s11, 0
    %p31 = por %p29, %p30
    %p32 = scmp.ne.s32.totalorder %s21, %s24
    %p33 = scmp.eq.s32.totalorder %s16, 1
    %p34 = por %p32, %p33
    %p35 = scmp.ne.s32.totalorder %s24, %s25
    %p36 = scmp.eq.s32.totalorder %s16, 0
    %p37 = por %p35, %p36
    %p38 = scmp.ne.s32.totalorder %s24, %s25
    %p39 = scmp.eq.s32.totalorder %s17, 1
    %p40 = por %p38, %p39
    %p42 = scmp.ne.s32.totalorder %s25, %s41
    %p43 = scmp.eq.s32.totalorder %s17, 0
    %p44 = por %p42, %p43
    %s46 = sadd.s32 %s45, 1
    %p49 = scmp.eq.s32.totalorder %s11, 1
    %p50 = scmp.ne.s32.totalorder %s45, %s47
    %p51 = scmp.eq.s32.totalorder %s11, 0
    %p52 = por %p50, %p51
    %p53 = scmp.ne.s32.totalorder %s45, %s47
    %p54 = scmp.eq.s32.totalorder %s16, 1
    %p55 = por %p53, %p54
    %p56 = scmp.ne.s32.totalorder %s47, %s48
    %p57 = scmp.eq.s32.totalorder %s16, 0
    %p58 = por %p56, %p57
    %p59 = scmp.ne.s32.totalorder %s47, %s48
    %p60 = scmp.eq.s32.totalorder %s17, 1
    %p61 = por %p59, %p60
    %p63 = scmp.ne.s32.totalorder %s48, %s62
    %p64 = scmp.eq.s32.totalorder %s17, 0
    %p65 = por %p63, %p64
    %s67 = sadd.s32 %s66, 1
    %p70 = scmp.eq.s32.totalorder %s11, 1
    %p71 = scmp.ne.s32.totalorder %s66, %s68
    %p72 = scmp.eq.s32.totalorder %s11, 0
    %p73 = por %p71, %p72
    %p74 = scmp.ne.s32.totalorder %s66, %s68
    %p75 = scmp.eq.s32.totalorder %s16, 1
    %p76 = por %p74, %p75
    %p77 = scmp.ne.s32.totalorder %s68, %s69
    %p78 = scmp.eq.s32.totalorder %s16, 0
    %p79 = por %p77, %p78
    %p80 = scmp.ne.s32.totalorder %s68, %s69
    %p81 = scmp.eq.s32.totalorder %s17, 1
    %p82 = por %p80, %p81
    %p84 = scmp.ne.s32.totalorder %s69, %s83
    %p85 = scmp.eq.s32.totalorder %s17, 0
    %p86 = por %p84, %p85
    %s88 = sadd.s32 %s87, 1
    %p91 = scmp.eq.s32.totalorder %s11, 1
    %p92 = scmp.ne.s32.totalorder %s87, %s89
    %p93 = scmp.eq.s32.totalorder %s11, 0
    %p94 = por %p92, %p93
    %p95 = scmp.ne.s32.totalorder %s87, %s89
    %p96 = scmp.eq.s32.totalorder %s16, 1
    %p97 = por %p95, %p96
    %p98 = scmp.ne.s32.totalorder %s89, %s90
    %p99 = scmp.eq.s32.totalorder %s16, 0
    %p100 = por %p98, %p99
    %p101 = scmp.ne.s32.totalorder %s89, %s90
    %p102 = scmp.eq.s32.totalorder %s17, 1
    %p103 = por %p101, %p102
    %p105 = scmp.ne.s32.totalorder %s90, %s104
    %p106 = scmp.eq.s32.totalorder %s17, 0
    %p107 = por %p105, %p106
    %s109 = sadd.s32 %s108, 1
    %p112 = scmp.eq.s32.totalorder %s11, 1
    %p113 = scmp.ne.s32.totalorder %s108, %s110
    %p114 = scmp.eq.s32.totalorder %s11, 0
    %p115 = por %p113, %p114
    %p116 = scmp.ne.s32.totalorder %s108, %s110
    %p117 = scmp.eq.s32.totalorder %s16, 1
    %p118 = por %p116, %p117
    %p119 = scmp.ne.s32.totalorder %s110, %s111
    %p120 = scmp.eq.s32.totalorder %s16, 0
    %p121 = por %p119, %p120
    %p122 = scmp.ne.s32.totalorder %s110, %s111
    %p123 = scmp.eq.s32.totalorder %s17, 1
    %p124 = por %p122, %p123
    %p126 = scmp.ne.s32.totalorder %s111, %s125
    %p127 = scmp.eq.s32.totalorder %s17, 0
    %p128 = por %p126, %p127
    %s129 = ssub.s32 %s11, %s18
    %p130 = scmp.eq.s32.totalorder %s129, 0
    %s132 = sadd.s32 %s131, 1
    %s133 = scalar_select %p130, %s131, %s132
    %p136 = pneg %p130
    %p137 = scmp.eq.s32.totalorder %s11, 1
    %p138 = por %p136, %p137
    %p139 = scmp.ne.s32.totalorder %s131, %s134
    %p140 = scmp.eq.s32.totalorder %s11, 0
    %p141 = por %p139, %p140
    %p142 = scmp.ne.s32.totalorder %s131, %s134
    %p143 = scmp.eq.s32.totalorder %s16, 1
    %p144 = por %p142, %p143
    %p145 = scmp.ne.s32.totalorder %s134, %s135
    %p146 = scmp.eq.s32.totalorder %s16, 0
    %p147 = por %p145, %p146
    %p148 = scmp.ne.s32.totalorder %s134, %s135
    %p149 = scmp.eq.s32.totalorder %s17, 1
    %p150 = por %p148, %p149
    %p152 = scmp.ne.s32.totalorder %s135, %s151
    %p153 = scmp.eq.s32.totalorder %s17, 0
    %p154 = por %p152, %p153
    %p155 = scmp.le.s32.totalorder 1, %s11
    %p156 = scmp.lt.s32.totalorder %s11, 3
    %p157 = pnand %p155, %p156
    %p158 = pneg %p157
    // Predicated region
    $region9: #{head_forward.1} parent=5 // pred_check
      _
    $region10: #{head_forward.1} parent=5 // pred_check_branch
      %160 = sbr.rel (%p157) target = $region12
    $region11: #{head_forward.1} parent=5 // pred_region
      %s161 = ssub.s32 %s11, 1
      // Predicated region
      $region13: #{head_forward.1} parent=11 // pred_check
        %p162 = pneg %p58
      $region14: #{head_forward.1} parent=11 // pred_check_branch
        %164 = sbr.rel (%p162) target = $region16
      $region15: #{head_forward.1} parent=11 // pred_region
        _
      $region16: #{head_forward.1} parent=11 // pred_fallthru
        _
      // Predicated region
      $region17: #{head_forward.1} parent=11 // pred_check
        %p165 = pneg %p79
      $region18: #{head_forward.1} parent=11 // pred_check_branch
        %167 = sbr.rel (%p165) target = $region20
      $region19: #{head_forward.1} parent=11 // pred_region
        _
      $region20: #{head_forward.1} parent=11 // pred_fallthru
        _
      // Predicated region
      $region21: #{head_forward.1} parent=11 // pred_check
        %p168 = pneg %p100
      $region22: #{head_forward.1} parent=11 // pred_check_branch
        %170 = sbr.rel (%p168) target = $region24
      $region23: #{head_forward.1} parent=11 // pred_region
        _
      $region24: #{head_forward.1} parent=11 // pred_fallthru
        _
      // Predicated region
      $region25: #{head_forward.1} parent=11 // pred_check
        %p171 = pneg %p121
      $region26: #{head_forward.1} parent=11 // pred_check_branch
        %173 = sbr.rel (%p171) target = $region28
      $region27: #{head_forward.1} parent=11 // pred_region
        _
      $region28: #{head_forward.1} parent=11 // pred_fallthru
        _
    $region12: #{head_forward.1} parent=5 // pred_fallthru
      _
    %p174 = scmp.lt.s32.totalorder %s11, 2
    // Predicated region
    $region29: #{head_forward.1} parent=5 // pred_check
      %p175 = pneg %p174
    $region30: #{head_forward.1} parent=5 // pred_check_branch
      %177 = sbr.rel (%p175) target = $region32
    $region31: #{head_forward.1} parent=5 // pred_region
      // Predicated region
      $region33: #{head_forward.1} parent=31 // pred_check
        %p178 = pneg %p31
      $region34: #{head_forward.1} parent=31 // pred_check_branch
        %180 = sbr.rel (%p178) target = $region36
      $region35: #{head_forward.1} parent=31 // pred_region
        %p181 = scmp.lt.s32.totalorder %s11, 1
        %s182 = scalar_select %p181, %s11, 1
        %s183 = smul.addr %s182, 10
        %s184 = smul.addr %s183, 8
        %s185 = scalar_lea.vmem %s0, %s184
      $region36: #{head_forward.1} parent=31 // pred_fallthru
        _
    $region32: #{head_forward.1} parent=5 // pred_fallthru
      _
    %p186 = scmp.le.s32.totalorder 1, %s11
    %p187 = scmp.lt.s32.totalorder %s11, 3
    %p188 = pnand %p186, %p187
    %p189 = pneg %p188
    // Predicated region
    $region37: #{head_forward.1} parent=5 // pred_check
      _
    $region38: #{head_forward.1} parent=5 // pred_check_branch
      %191 = sbr.rel (%p188) target = $region40
    $region39: #{head_forward.1} parent=5 // pred_region
      %s192 = ssub.s32 %s11, 1
      %p193 = scmp.lt.s32.totalorder %s16, 1
      %s194 = scalar_select %p193, %s16, 1
      %s195 = smul.addr %s194, 10
      %s196 = smul.addr %s195, 8
      %s197 = scalar_lea.vmem %s0, %s196
      %p198 = pneg %p37
      %p199 = pneg %p34
      %p200 = pneg %p58
      %p201 = pneg %p55
      %p202 = pneg %p79
      %p203 = pneg %p76
      %p204 = pneg %p100
      %p205 = pneg %p97
      %p206 = pneg %p121
      %p207 = pneg %p118
      %p208 = pneg %p147
      %p209 = pneg %p144
      %p210 = scmp.lt.s32.totalorder %s16, 1
      %s211 = scalar_select %p210, %s16, 1
      %s212 = smul.addr %s211, 6
      %s213 = smul.addr %s212, 8
      %s214 = scalar_lea.vmem %s5, %s213
      %p215 = scmp.lt.s32.totalorder %s16, 1
      %s216 = scalar_select %p215, %s16, 1
      %s217 = smul.addr %s216, 10
      %s218 = smul.addr %s217, 8
      %s219 = scalar_lea.vmem %s0, %s218
      %p220 = scmp.lt.s32.totalorder %s16, 1
      %s221 = scalar_select %p220, %s16, 1
      %s222 = smul.addr %s221, 6
      %s223 = smul.addr %s222, 8
      %s224 = scalar_lea.vmem %s5, %s223
      %v225 = vld [vmem:[%s219] sm:$0xff]
      %v226 = vld [vmem:[%s219 + $0x8] sm:$0xff]
      %v227 = vld [vmem:[%s219 + $0x10] sm:$0xff]
      %v228 = vld [vmem:[%s219 + $0x18] sm:$0xff]
      %v229 = vld [vmem:[%s219 + $0x20] sm:$0xff]
      %v230 = vld [vmem:[%s219 + $0x28] sm:$0xff]
      %v231 = vld [vmem:[%s219 + $0x30] sm:$0xff]
      %v232 = vld [vmem:[%s219 + $0x38] sm:$0xff]
      %v233 = vld [vmem:[%s219 + $0x40] sm:$0xf]
      %v234 = vld [vmem:[%s219 + $0x48] sm:$0xf]
      %v235 = vld [vmem:[%s1] sm:$0xff]
      %v236 = vld [vmem:[%s2] sm:$0xff]
      %238 = vset.pattern.permute.xlu0 0
      %239 = vperm.xlu0 %238, %v236
      %v240 = vpop.permute.xlu0 %239
      %vm242 = vcmask 293888
      %v244 = vsel %vm242, %v235, 0
      %vm246 = vcmask 1043456
      %v248 = vsel %vm246, %v233, 0
      %v251 = vsel %vm246, %v234, 0
      %253 = vmatprep.subr.mxu0 0.0
      %254 = vmatpush1.msra.mxu0 0.0
      %255 = vmatprep.subr.mxu0 0.0
      %256 = vmatpush1.msra.mxu0 0.0
      %257 = vmatprep.subr.mxu0 0.0
      %258 = vmatpush1.msra.mxu0 0.0
      %259 = vmatprep.subr.mxu0 0.0
      %260 = vmatpush1.msra.mxu0 0.0
      %261 = vmatprep.subr.mxu0 0.0
      %262 = vmatpush1.msra.mxu0 0.0
      %263 = vmatprep.subr.mxu0 0.0
      %264 = vmatpush1.msra.mxu0 0.0
      %265 = vmatprep.subr.mxu0 0.0
      %266 = vmatpush1.msra.mxu0 0.0
      %267 = vmatprep.subr.mxu0 0.0
      %268 = vmatpush1.msra.mxu0 0.0
      %269 = vmatprep.subr.mxu0 0.0
      %270 = vmatpush1.msra.mxu0 0.0
      %271 = vmatprep.subr.mxu0 0.0
      %272 = vmatpush1.msra.mxu0 0.0
      %273 = vmatprep.subr.mxu0 0.0
      %274 = vmatpush1.msra.mxu0 0.0
      %275 = vmatprep.subr.mxu0 %v251
      %276 = vmatpush1.msra.mxu0 %v248
      %277 = vmatprep.subr.mxu0 %v232
      %278 = vmatpush1.msra.mxu0 %v231
      %279 = vmatprep.subr.mxu0 %v230
      %280 = vmatpush1.msra.mxu0 %v229
      %281 = vmatprep.subr.mxu0 %v228
      %282 = vmatpush1.msra.mxu0 %v227
      %283 = vmatprep.subr.mxu0 %v226
      %284 = vmatpush1.msra.mxu0 %v225
      %285 = vmatprep.subr.mxu0 0.0
      %286 = vmatpush2.msra.mxu0 0.0
      %287 = vmatprep.subr.mxu0 0.0
      %288 = vmatpush2.msra.mxu0 0.0
      %289 = vmatprep.subr.mxu0 0.0
      %290 = vmatpush2.msra.mxu0 0.0
      %291 = vmatprep.subr.mxu0 0.0
      %292 = vmatpush2.msra.mxu0 0.0
      %293 = vmatprep.subr.mxu0 0.0
      %294 = vmatpush2.msra.mxu0 0.0
      %295 = vmatprep.subr.mxu0 0.0
      %296 = vmatpush2.msra.mxu0 0.0
      %297 = vmatprep.subr.mxu0 0.0
      %298 = vmatpush2.msra.mxu0 0.0
      %299 = vmatprep.subr.mxu0 0.0
      %300 = vmatpush2.msra.mxu0 0.0
      %301 = vmatprep.subr.mxu0 0.0
      %302 = vmatpush2.msra.mxu0 0.0
      %303 = vmatprep.subr.mxu0 0.0
      %304 = vmatpush2.msra.mxu0 0.0
      %305 = vmatprep.subr.mxu0 0.0
      %306 = vmatpush2.msra.mxu0 0.0
      %307 = vmatprep.subr.mxu0 0.0
      %308 = vmatpush2.msra.mxu0 0.0
      %309 = vmatprep.subr.mxu0 0.0
      %310 = vmatpush2.msra.mxu0 0.0
      %311 = vmatprep.subr.mxu0 0.0
      %312 = vmatpush2.msra.mxu0 0.0
      %313 = vmatprep.subr.mxu0 0.0
      %314 = vmatpush2.msra.mxu0 0.0
      %315 = vmatprep.subr.mxu0 0.0
      %316 = vmatpush2.msra.mxu0 0.0
      %317 = vmatprep.mubr.f32.mxu0 0.0
      %318 = vmatmul.mubr.f32.gmra.mxu0 %v244
      %v319 = vpop.f32.mrf.mxu0
      %v320 = vadd.f32 %v240, %v319
      %v321 = vpop.f32.mrf.mxu0
      %v322 = vadd.f32 %v240, %v321
      %323 = vdwg.mxu0
      %vm324 = vcmp.gt.f32.partialorder %v320, 0.0
      %vm325 = vcmp.gt.f32.partialorder %v322, 0.0
      %v326 = vmul.f32 %v320, 0.1
      %v327 = vmul.f32 %v322, 0.1
      %v328 = vsel %vm324, %v320, %v326
      %v329 = vsel %vm325, %v322, %v327
      %v330 = vld [vmem:[%s3] sm:$0xff]
      %v331 = vld [vmem:[%s3 + $0x8] sm:$0xff]
      %v332 = vld [vmem:[%s3 + $0x10] sm:$0x1f]
      %v333 = vld [vmem:[%s4] sm:$0xff]
      %v334 = vld [vmem:[%s4 + $0x8] sm:$0xff]
      %v335 = vld [vmem:[%s4 + $0x10] sm:$0x1f]
      %337 = vset.pattern.permute.xlu0 0
      %338 = vperm.xlu0 %337, %v333
      %v339 = vpop.permute.xlu0 %338
      %342 = vset.pattern.permute.xlu0 0
      %343 = vperm.xlu0 %342, %v334
      %v344 = vpop.permute.xlu0 %343
      %347 = vset.pattern.permute.xlu0 0
      %348 = vperm.xlu0 %347, %v335
      %v349 = vpop.permute.xlu0 %348
      %vm351 = vcmask 64512
      %v353 = vsel %vm351, %v330, 0
      %v356 = vsel %vm351, %v331, 0
      %v359 = vsel %vm351, %v332, 0
      %361 = vmatprep.subr.mxu0 0.0
      %362 = vmatpush1.msra.mxu0 0.0
      %363 = vmatprep.subr.mxu0 0.0
      %364 = vmatpush1.msra.mxu0 0.0
      %365 = vmatprep.subr.mxu0 0.0
      %366 = vmatpush1.msra.mxu0 0.0
      %367 = vmatprep.subr.mxu0 0.0
      %368 = vmatpush1.msra.mxu0 0.0
      %369 = vmatprep.subr.mxu0 0.0
      %370 = vmatpush1.msra.mxu0 0.0
      %371 = vmatprep.subr.mxu0 0.0
      %372 = vmatpush1.msra.mxu0 0.0
      %373 = vmatprep.subr.mxu0 0.0
      %374 = vmatpush1.msra.mxu0 0.0
      %375 = vmatprep.subr.mxu0 0.0
      %376 = vmatpush1.msra.mxu0 0.0
      %377 = vmatprep.subr.mxu0 0.0
      %378 = vmatpush1.msra.mxu0 0.0
      %379 = vmatprep.subr.mxu0 0.0
      %380 = vmatpush1.msra.mxu0 0.0
      %381 = vmatprep.subr.mxu0 0.0
      %382 = vmatpush1.msra.mxu0 0.0
      %383 = vmatprep.subr.mxu0 0.0
      %384 = vmatpush1.msra.mxu0 0.0
      %385 = vmatprep.subr.mxu0 0.0
      %386 = vmatpush1.msra.mxu0 0.0
      %387 = vmatprep.subr.mxu0 0.0
      %388 = vmatpush1.msra.mxu0 0.0
      %389 = vmatprep.subr.mxu0 0.0
      %390 = vmatpush1.msra.mxu0 0.0
      %391 = vmatprep.subr.mxu0 %v329
      %392 = vmatpush1.msra.mxu0 %v328
      %393 = vmatprep.subr.mxu0 0.0
      %394 = vmatpush2.msra.mxu0 0.0
      %395 = vmatprep.subr.mxu0 0.0
      %396 = vmatpush2.msra.mxu0 0.0
      %397 = vmatprep.subr.mxu0 0.0
      %398 = vmatpush2.msra.mxu0 0.0
      %399 = vmatprep.subr.mxu0 0.0
      %400 = vmatpush2.msra.mxu0 0.0
      %401 = vmatprep.subr.mxu0 0.0
      %402 = vmatpush2.msra.mxu0 0.0
      %403 = vmatprep.subr.mxu0 0.0
      %404 = vmatpush2.msra.mxu0 0.0
      %405 = vmatprep.subr.mxu0 0.0
      %406 = vmatpush2.msra.mxu0 0.0
      %407 = vmatprep.subr.mxu0 0.0
      %408 = vmatpush2.msra.mxu0 0.0
      %409 = vmatprep.subr.mxu0 0.0
      %410 = vmatpush2.msra.mxu0 0.0
      %411 = vmatprep.subr.mxu0 0.0
      %412 = vmatpush2.msra.mxu0 0.0
      %413 = vmatprep.subr.mxu0 0.0
      %414 = vmatpush2.msra.mxu0 0.0
      %415 = vmatprep.subr.mxu0 0.0
      %416 = vmatpush2.msra.mxu0 0.0
      %417 = vmatprep.subr.mxu0 0.0
      %418 = vmatpush2.msra.mxu0 0.0
      %419 = vmatprep.subr.mxu0 0.0
      %420 = vmatpush2.msra.mxu0 0.0
      %421 = vmatprep.subr.mxu0 0.0
      %422 = vmatpush2.msra.mxu0 0.0
      %423 = vmatprep.subr.mxu0 0.0
      %424 = vmatpush2.msra.mxu0 0.0
      %425 = vmatprep.mubr.f32.mxu0 0.0
      %426 = vmatmul.mubr.f32.gmra.mxu0 %v353
      %v427 = vpop.f32.mrf.mxu0
      %v428 = vadd.f32 %v339, %v427
      %v429 = vpop.f32.mrf.mxu0
      %v430 = vadd.f32 %v339, %v429
      %431 = vmatprep.mubr.f32.mxu0 0.0
      %432 = vmatmul.mubr.f32.gmra.mxu0 %v356
      %v433 = vpop.f32.mrf.mxu0
      %v434 = vadd.f32 %v344, %v433
      %v435 = vpop.f32.mrf.mxu0
      %v436 = vadd.f32 %v344, %v435
      %437 = vmatprep.mubr.f32.mxu0 0.0
      %438 = vmatmul.mubr.f32.gmra.mxu0 %v359
      %v439 = vpop.f32.mrf.mxu0
      %v440 = vadd.f32 %v349, %v439
      %v441 = vpop.f32.mrf.mxu0
      %v442 = vadd.f32 %v349, %v441
      %443 = vdwg.mxu0
      %444 = vst [vmem:[%s224] sm:$0xff] %v428
      %445 = vst [vmem:[%s224 + $0x8] sm:$0xff] %v430
      %446 = vst [vmem:[%s224 + $0x10] sm:$0xff] %v434
      %447 = vst [vmem:[%s224 + $0x18] sm:$0xff] %v436
      %448 = vst [vmem:[%s224 + $0x20] sm:$0x1f] %v440
      %449 = vst [vmem:[%s224 + $0x28] sm:$0x1f] %v442
      %p450 = scmp.lt.s32.totalorder %s16, 1
      %s451 = scalar_select %p450, %s16, 1
      %s452 = smul.addr %s451, 6
      %s453 = smul.addr %s452, 8
      %s454 = scalar_lea.vmem %s5, %s453
      // Predicated region
      $region41: #{head_forward.1} parent=39 // pred_check
        %p455 = pneg %p144
      $region42: #{head_forward.1} parent=39 // pred_check_branch
        %457 = sbr.rel (%p455) target = $region44
      $region43: #{head_forward.1} parent=39 // pred_region
        _
      $region44: #{head_forward.1} parent=39 // pred_fallthru
        _
    $region40: #{head_forward.1} parent=5 // pred_fallthru
      _
    %p458 = scmp.le.s32.totalorder 2, %s11
    // Predicated region
    $region45: #{head_forward.1} parent=5 // pred_check
      %p459 = pneg %p458
    $region46: #{head_forward.1} parent=5 // pred_check_branch
      %461 = sbr.rel (%p459) target = $region48
    $region47: #{head_forward.1} parent=5 // pred_region
      %s462 = ssub.s32 %s11, 2
      // Predicated region
      $region49: #{head_forward.1} parent=47 // pred_check
        %p463 = pneg %p150
      $region50: #{head_forward.1} parent=47 // pred_check_branch
        %465 = sbr.rel (%p463) target = $region52
      $region51: #{head_forward.1} parent=47 // pred_region
        %p466 = scmp.lt.s32.totalorder %s17, 1
        %s467 = scalar_select %p466, %s17, 1
        %s468 = smul.addr %s467, 6
        %s469 = smul.addr %s468, 8
        %s470 = scalar_lea.vmem %s5, %s469
      $region52: #{head_forward.1} parent=47 // pred_fallthru
        _
    $region48: #{head_forward.1} parent=5 // pred_fallthru
      _
  $region6: #{head_forward.1} parent=0 // loop_footer
    %s15 = sadd.s32 1, %s11
  $region7: #{head_forward.1} parent=0 // loop_footer_branch
    %10 = sbr.rel target = $region3
  $region8: #{head_forward.1} parent=0 // loop_exit
    _

</llo_original>
